<compile_context>
chip_gen: v6e
topology: v6e:2x2x1
jax: 0.10.0
libtpu: 0.0.40
codegen_flags: <defaults>
</compile_context>

<pallas_src>
import functools

import jax
import jax.numpy as jnp
from jax.experimental import pallas as pl
from jax.experimental.pallas import tpu as pltpu


def adain1d_kernel(g1_ref, beta_ref, x_ref, o_ref, *, inv_t, tc, num_ct):
    """One (TC, T) channel-tile of one batch element.

    g1_ref, beta_ref: (C, 1) f32  -- full-channel slabs, resident per batch.
    x_ref, o_ref:     (TC, T)     -- C on sublanes, T (full, unpadded) on lanes.
    inv_t: static 1 / T.  tc / num_ct: static channel-tile size / count.
    """
    # --- One-pass per-channel statistics (f32 accumulation) -----------------
    # NOTE: E[x^2] - E[x]^2 can lose precision when |mean| >> std; a two-pass
    # variance over the resident VMEM tile would fix that at zero extra HBM
    # traffic if tighter tolerances are ever required.
    xf = x_ref[...].astype(jnp.float32)                    # (TC, T)
    s1 = jnp.sum(xf, axis=-1, keepdims=True)               # (TC, 1)
    s2 = jnp.sum(xf * xf, axis=-1, keepdims=True)          # (TC, 1)
    mean = s1 * inv_t
    var = jnp.maximum(s2 * inv_t - mean * mean, 0.0)       # biased variance
    inv = jax.lax.rsqrt(var + 1e-5)                        # EUP rsqrt

    # --- Per-tile (1+gamma) / beta rows from the resident full-C slabs ------
    if num_ct == 1:                                        # static Python branch
        g1 = g1_ref[...]
        beta = beta_ref[...]
    else:
        off = pl.multiple_of(pl.program_id(1) * tc, tc)    # tc is 8-aligned here
        g1 = g1_ref[pl.ds(off, tc), :]                     # (TC, 1)
        beta = beta_ref[pl.ds(off, tc), :]

    # --- Fused affine: out = x * scale + shift -------------------------------
    scale = g1 * inv                                       # (TC, 1)
    shift = beta - mean * scale                            # (TC, 1)
    # Re-read x_ref so the f32 reduction temp need not stay live across the
    # affine pass (VMEM/vreg pressure for bf16 inputs at large tiles).
    o_ref[...] = (x_ref[...].astype(jnp.float32) * scale + shift).astype(o_ref.dtype)


def _vmem_budget():
    """(target block bytes, vmem_limit_bytes) sized per TPU generation."""
    try:
        cap = int(pltpu.get_tpu_info().vmem_capacity_bytes)
    except Exception:
        cap = 128 << 20
    if cap <= (64 << 20):
        # v7x-class (64 MiB/TC): ~6 MiB blocks; 2 in-bufs + 2 out-bufs + f32
        # temp ~= 30-36 MiB, well under a 48 MiB scoped limit.
        return 6 << 20, 48 << 20
    # v5e / v6e (128 MiB): bigger DMAs push toward the ~86% roofline plateau.
    return 12 << 20, 80 << 20


def _choose_tc(B, C, T, itemsize, target_bytes, min_steps=8):
    """Channel-tile: sublane-aligned divisor of C, block <= target bytes, and
    (when possible) enough grid steps to pipeline / feed both v7x cores."""
    sub = max(8, 32 // itemsize)          # f32 -> 8, bf16 -> 16
    if C % sub != 0:
        return C                          # block must then equal the full dim
    cands = [t for t in range(sub, C + 1, sub) if C % t == 0]
    fit = [t for t in cands if t * T * itemsize <= target_bytes] or [sub]
    deep = [t for t in fit if B * (C // t) >= min_steps]
    return max(deep) if deep else max(fit)


def adain1d(x, s, w, b, *, tc=None, vmem_limit_bytes=None):
    """x: (B, C, T), s: (B, S), w: (2C, S) [torch Linear layout], b: (2C,)."""
    B, C, T = x.shape
    itemsize = x.dtype.itemsize

    # --- Hoisted nn.Linear (plain XLA): h = s @ W.T + b -> (B, 2C) ----------
    h = (s.astype(jnp.float32) @ w.T.astype(jnp.float32)
         + b.astype(jnp.float32))
    g1 = (1.0 + h[:, :C]).reshape(B, C, 1)                 # (B, C, 1) f32
    beta = h[:, C:].reshape(B, C, 1)                       # (B, C, 1) f32

    target_bytes, default_vmem = _vmem_budget()
    if vmem_limit_bytes is None:
        vmem_limit_bytes = default_vmem

    sub = max(8, 32 // itemsize)
    if tc is None:
        TC = _choose_tc(B, C, T, itemsize, target_bytes)
    else:
        if C % tc != 0:
            raise ValueError(f"tc={tc} must divide num_features C={C}")
        if tc != C and tc % sub != 0:
            raise ValueError(f"tc={tc} must be a multiple of {sub} when < C={C}")
        TC = tc
    num_ct = C // TC
    grid = (B, num_ct)

    elems = B * C * T
    cost = pl.CostEstimate(
        flops=6 * elems,
        transcendentals=B * C,
        bytes_accessed=2 * elems * itemsize + 4 * B * C * 4,
    )

    kernel = functools.partial(adain1d_kernel, inv_t=1.0 / T, tc=TC, num_ct=num_ct)
    return pl.pallas_call(
        kernel,
        out_shape=jax.ShapeDtypeStruct((B, C, T), x.dtype),
        grid_spec=pltpu.PrefetchScalarGridSpec(
            num_scalar_prefetch=0,
            grid=grid,
            in_specs=[
                # (1+gamma) / beta: full-C slabs, index constant along the
                # channel axis -> resident per batch element (no per-step DMA).
                pl.BlockSpec((pl.Squeezed(), C, 1), lambda bi, ci: (bi, 0, 0)),
                pl.BlockSpec((pl.Squeezed(), C, 1), lambda bi, ci: (bi, 0, 0)),
                # x: channel tile, full (unpadded) time axis per block.
                pl.BlockSpec((pl.Squeezed(), TC, T), lambda bi, ci: (bi, ci, 0)),
            ],
            out_specs=pl.BlockSpec((pl.Squeezed(), TC, T),
                                   lambda bi, ci: (bi, ci, 0)),
        ),
        compiler_params=pltpu.CompilerParams(
            dimension_semantics=("parallel", "parallel"),
            vmem_limit_bytes=vmem_limit_bytes),
        cost_estimate=cost,
    )(g1, beta, x)


def adain1d_ref(x, s, w, b):
    """Pure-JAX reference matching the PyTorch module."""
    h = s @ w.T + b                                       # (B, 2C)
    C = x.shape[1]
    gamma = h[:, :C][:, :, None]                          # (B, C, 1)
    beta = h[:, C:][:, :, None]
    mean = jnp.mean(x, axis=-1, keepdims=True)
    var = jnp.mean((x - mean) ** 2, axis=-1, keepdims=True)
    x_norm = (x - mean) / jnp.sqrt(var + 1e-5)
    return (1.0 + gamma) * x_norm + beta


if __name__ == "__main__":
    B, C, T = 2, 4, 16          # batch, num_features, sequence length
    STYLE = 32                  # style_dim

    key = jax.random.PRNGKey(0)
    kx, ks, kw, kb = jax.random.split(key, 4)

    x = jax.random.normal(kx, (B, C, T), dtype=jnp.float32)
    s = jax.random.normal(ks, (B, STYLE), dtype=jnp.float32)

    # Deterministic Linear(style_dim, 2*num_features) params.
    bound = 1.0 / (STYLE ** 0.5)
    w = jax.random.uniform(kw, (2 * C, STYLE), jnp.float32, -bound, bound)
    b = jax.random.uniform(kb, (2 * C,), jnp.float32, -bound, bound)

    out = jax.block_until_ready(adain1d(x, s, w, b))
    ref = adain1d_ref(x, s, w, b)

    assert out.shape == (B, C, T)
    assert jnp.allclose(out, ref, atol=1e-4, rtol=1e-4), "mismatch vs reference"

    print("KERNEL_OK")
</pallas_src>

<mosaic_0001>
module attributes {stable_mosaic.version = 11 : i64} {
  func.func @adain1d_kernel(%arg0: i32, %arg1: i32, %arg2: memref<1x4x1xf32, #tpu.memory_space<vmem>>, %arg3: memref<1x4x1xf32, #tpu.memory_space<vmem>>, %arg4: memref<1x4x16xf32, #tpu.memory_space<vmem>>, %arg5: memref<1x4x16xf32, #tpu.memory_space<vmem>>) attributes {dimension_semantics = [#tpu.dimension_semantics<parallel>, #tpu.dimension_semantics<parallel>], iteration_bounds = array<i64: 2, 1>, scalar_prefetch = 0 : i64, scratch_operands = 0 : i64, tpu.core_type = #tpu.core_type<tc>, window_params = [{transform_indices = @transform_0, window_bounds = array<i64: 1, 4, 1>}, {transform_indices = @transform_1, window_bounds = array<i64: 1, 4, 1>}, {transform_indices = @transform_2, window_bounds = array<i64: 1, 4, 16>}, {transform_indices = @transform_3, window_bounds = array<i64: 1, 4, 16>}]} {
    %c0 = arith.constant 0 : index
    %c0_0 = arith.constant 0 : index
    %c0_1 = arith.constant 0 : index
    %0 = vector.load %arg4[%c0, %c0_0, %c0_1] : memref<1x4x16xf32, #tpu.memory_space<vmem>>, vector<1x4x16xf32>
    %1 = vector.shape_cast %0 : vector<1x4x16xf32> to vector<4x16xf32>
    %cst = arith.constant dense<0.000000e+00> : vector<4xf32>
    %2 = vector.multi_reduction <add>, %1, %cst [1] : vector<4x16xf32> to vector<4xf32>
    %3 = vector.shape_cast %2 : vector<4xf32> to vector<4x1xf32>
    %4 = arith.mulf %1, %1 : vector<4x16xf32>
    %cst_2 = arith.constant dense<0.000000e+00> : vector<4xf32>
    %5 = vector.multi_reduction <add>, %4, %cst_2 [1] : vector<4x16xf32> to vector<4xf32>
    %6 = vector.shape_cast %5 : vector<4xf32> to vector<4x1xf32>
    %cst_3 = arith.constant 6.250000e-02 : f32
    %7 = vector.broadcast %cst_3 : f32 to vector<4x1xf32>
    %8 = arith.mulf %3, %7 : vector<4x1xf32>
    %cst_4 = arith.constant 6.250000e-02 : f32
    %9 = vector.broadcast %cst_4 : f32 to vector<4x1xf32>
    %10 = arith.mulf %6, %9 : vector<4x1xf32>
    %11 = arith.mulf %8, %8 : vector<4x1xf32>
    %12 = arith.subf %10, %11 : vector<4x1xf32>
    %cst_5 = arith.constant 0.000000e+00 : f32
    %13 = vector.broadcast %cst_5 : f32 to vector<4x1xf32>
    %14 = arith.maximumf %12, %13 : vector<4x1xf32>
    %cst_6 = arith.constant 9.99999974E-6 : f32
    %15 = vector.broadcast %cst_6 : f32 to vector<4x1xf32>
    %16 = arith.addf %14, %15 : vector<4x1xf32>
    %17 = math.rsqrt %16 : vector<4x1xf32>
    %c0_7 = arith.constant 0 : index
    %c0_8 = arith.constant 0 : index
    %c0_9 = arith.constant 0 : index
    %18 = vector.load %arg2[%c0_7, %c0_8, %c0_9] : memref<1x4x1xf32, #tpu.memory_space<vmem>>, vector<1x4x1xf32>
    %19 = vector.shape_cast %18 : vector<1x4x1xf32> to vector<4x1xf32>
    %c0_10 = arith.constant 0 : index
    %c0_11 = arith.constant 0 : index
    %c0_12 = arith.constant 0 : index
    %20 = vector.load %arg3[%c0_10, %c0_11, %c0_12] : memref<1x4x1xf32, #tpu.memory_space<vmem>>, vector<1x4x1xf32>
    %21 = vector.shape_cast %20 : vector<1x4x1xf32> to vector<4x1xf32>
    %22 = arith.mulf %19, %17 : vector<4x1xf32>
    %23 = arith.mulf %8, %22 : vector<4x1xf32>
    %24 = arith.subf %21, %23 : vector<4x1xf32>
    %c0_13 = arith.constant 0 : index
    %c0_14 = arith.constant 0 : index
    %c0_15 = arith.constant 0 : index
    %25 = vector.load %arg4[%c0_13, %c0_14, %c0_15] : memref<1x4x16xf32, #tpu.memory_space<vmem>>, vector<1x4x16xf32>
    %26 = vector.shape_cast %25 : vector<1x4x16xf32> to vector<4x16xf32>
    %27 = vector.broadcast %22 : vector<4x1xf32> to vector<4x16xf32>
    %28 = arith.mulf %26, %27 : vector<4x16xf32>
    %29 = vector.broadcast %24 : vector<4x1xf32> to vector<4x16xf32>
    %30 = arith.addf %28, %29 : vector<4x16xf32>
    %c0_16 = arith.constant 0 : index
    %c0_17 = arith.constant 0 : index
    %c0_18 = arith.constant 0 : index
    %31 = vector.load %arg5[%c0_16, %c0_17, %c0_18] : memref<1x4x16xf32, #tpu.memory_space<vmem>>, vector<1x4x16xf32>
    %32 = vector.shape_cast %31 : vector<1x4x16xf32> to vector<4x16xf32>
    %33 = vector.shape_cast %30 : vector<4x16xf32> to vector<1x4x16xf32>
    tpu.vector_store %arg5[%c0_16, %c0_17, %c0_18], %33 {strides = array<i32>} : memref<1x4x16xf32, #tpu.memory_space<vmem>>, vector<1x4x16xf32>,
    return
  }
  func.func @transform_0(%arg0: i32, %arg1: i32) -> (i32, i32, i32) {
    %c0_i32 = arith.constant 0 : i32
    %c0_i32_0 = arith.constant 0 : i32
    %c0_i32_1 = arith.constant 0 : i32
    return %arg0, %c0_i32, %c0_i32_0 : i32, i32, i32
  }
  func.func @transform_1(%arg0: i32, %arg1: i32) -> (i32, i32, i32) {
    %c0_i32 = arith.constant 0 : i32
    %c0_i32_0 = arith.constant 0 : i32
    %c0_i32_1 = arith.constant 0 : i32
    return %arg0, %c0_i32, %c0_i32_0 : i32, i32, i32
  }
  func.func @transform_2(%arg0: i32, %arg1: i32) -> (i32, i32, i32) {
    %c0_i32 = arith.constant 0 : i32
    %c0_i32_0 = arith.constant 0 : i32
    return %arg0, %arg1, %c0_i32 : i32, i32, i32
  }
  func.func @transform_3(%arg0: i32, %arg1: i32) -> (i32, i32, i32) {
    %c0_i32 = arith.constant 0 : i32
    %c0_i32_0 = arith.constant 0 : i32
    return %arg0, %arg1, %c0_i32 : i32, i32, i32
  }
}

</mosaic_0001>

<llo_original>
// kernel: tpu_custom_call.1
$region0: #{tpu_custom_call.1}
  #allocation0 [shape = 'u32[]', space=smem, size = 0x4, offset = 0x4, fixed_abs, tag = 'smem constant byte address 0x4 - core index']
  #allocation1 [shape = 'u32[144,128]{1,0:T(1,128)}', space=vmem, size = 0x12000, scoped, tag = 'internal scratch']
  %s0 = inlined_call_operand.vmem [shape: f32[2,4,1], index: 0, kind: input, shape index: {}]
  %s1 = inlined_call_operand.vmem [shape: f32[2,4,1], index: 1, kind: input, shape index: {}]
  %s2 = inlined_call_operand.vmem [shape: f32[2,4,16], index: 2, kind: input, shape index: {}]
  %s3 = inlined_call_operand.hbm [shape: f32[2,4,16], index: 3, kind: output, shape index: {}]
  %s4 = sld [smem:[#allocation0]]
  $region45: #{tpu_custom_call.1} parent=0
    _
  %s6 = ssub.s32 1, %s4
  %s7 = scalar_select 0, %s6, %s4
  $region1: #{tpu_custom_call.1} parent=0
    #allocation2 [shape = 'u8[4096]{0}', space=vmem, size = 0x1000, scoped, tag = 'output window, operand 0']
    #allocation3 [shape = 's32[2]{0}', space=sflag, size = 0x8, scoped, tag = 'scoped memory for tpu_custom_call.1']
    %8 = vsyncpa [#allocation3], 0
    %s9 = scalar_lea.sflag [#allocation3], 1
    %10 = vsyncpa %s9, 0
    loop: start=0, step=1, limit=4
    $region2: #{tpu_custom_call.1} parent=1 // loop_pre_header
      _
    $region3: #{tpu_custom_call.1} parent=1 // loop_header
      %s12 = sphi 0, %s16
      %p13 = scmp.ge.s32.totalorder %s12, 4
      %s19 = sphi 0, %s31
      %s20 = sphi 0, %s27
      %s21 = sphi 0, %s19
      %s22 = sphi 0, %s20
      %s23 = sphi 0, %s21
      %s24 = sphi 0, %s22
      %s34 = sphi 0, %s36
      %s37 = sphi 0, %s34
      %s38 = sphi 0, %s37
      %s54 = sphi 0, %s38
      %s60 = sphi 0, %s62
      %s63 = sphi 0, %s60
      %s64 = sphi 0, %s63
      %s80 = sphi 0, %s64
      %s88 = sphi 0, %s90
      %s91 = sphi 0, %s88
      %s92 = sphi 0, %s91
      %s108 = sphi 0, %s92
      %s116 = sphi 0, %s118
      %s119 = sphi 0, %s116
      %s120 = sphi 0, %s119
      %s136 = sphi 0, %s120
    $region4: #{tpu_custom_call.1} parent=1 // loop_header_branch
      %15 = sbr.rel (%p13) target = $region8
    $region5: #{tpu_custom_call.1} parent=1 // loop_body
      %s17 = ssub.s32 %s12, 1
      %s18 = ssub.s32 %s12, 2
      %s25 = sadd.s32 1, %s20
      %p26 = scmp.ge.s32.totalorder %s25, 1
      %s27 = scalar_select %p26, 0, %s25
      %s28 = sadd.s32 1, %s19
      %s29 = scalar_select %p26, %s28, %s19
      %p30 = scmp.ge.s32.totalorder %s29, 2
      %s31 = scalar_select %p30, 0, %s29
      %s32 = ssub.s32 %s19, %s31
      %p33 = scmp.eq.s32.totalorder %s32, 0
      %s35 = sadd.s32 %s34, 1
      %s36 = scalar_select %p33, %s34, %s35
      %p39 = pneg %p33
      %p40 = scmp.eq.s32.totalorder %s12, 1
      %p41 = por %p39, %p40
      %p42 = scmp.ne.s32.totalorder %s34, %s37
      %p43 = scmp.eq.s32.totalorder %s12, 0
      %p44 = por %p42, %p43
      %p45 = scmp.ne.s32.totalorder %s34, %s37
      %p46 = scmp.eq.s32.totalorder %s17, 1
      %p47 = por %p45, %p46
      %p48 = scmp.ne.s32.totalorder %s37, %s38
      %p49 = scmp.eq.s32.totalorder %s17, 0
      %p50 = por %p48, %p49
      %p51 = scmp.ne.s32.totalorder %s37, %s38
      %p52 = scmp.eq.s32.totalorder %s18, 1
      %p53 = por %p51, %p52
      %p55 = scmp.ne.s32.totalorder %s38, %s54
      %p56 = scmp.eq.s32.totalorder %s18, 0
      %p57 = por %p55, %p56
      %s58 = ssub.s32 %s19, %s31
      %p59 = scmp.eq.s32.totalorder %s58, 0
      %s61 = sadd.s32 %s60, 1
      %s62 = scalar_select %p59, %s60, %s61
      %p65 = pneg %p59
      %p66 = scmp.eq.s32.totalorder %s12, 1
      %p67 = por %p65, %p66
      %p68 = scmp.ne.s32.totalorder %s60, %s63
      %p69 = scmp.eq.s32.totalorder %s12, 0
      %p70 = por %p68, %p69
      %p71 = scmp.ne.s32.totalorder %s60, %s63
      %p72 = scmp.eq.s32.totalorder %s17, 1
      %p73 = por %p71, %p72
      %p74 = scmp.ne.s32.totalorder %s63, %s64
      %p75 = scmp.eq.s32.totalorder %s17, 0
      %p76 = por %p74, %p75
      %p77 = scmp.ne.s32.totalorder %s63, %s64
      %p78 = scmp.eq.s32.totalorder %s18, 1
      %p79 = por %p77, %p78
      %p81 = scmp.ne.s32.totalorder %s64, %s80
      %p82 = scmp.eq.s32.totalorder %s18, 0
      %p83 = por %p81, %p82
      %s84 = ssub.s32 %s19, %s31
      %s85 = ssub.s32 %s20, %s27
      %s86 = sor.u32 %s84, %s85
      %p87 = scmp.eq.s32.totalorder %s86, 0
      %s89 = sadd.s32 %s88, 1
      %s90 = scalar_select %p87, %s88, %s89
      %p93 = pneg %p87
      %p94 = scmp.eq.s32.totalorder %s12, 1
      %p95 = por %p93, %p94
      %p96 = scmp.ne.s32.totalorder %s88, %s91
      %p97 = scmp.eq.s32.totalorder %s12, 0
      %p98 = por %p96, %p97
      %p99 = scmp.ne.s32.totalorder %s88, %s91
      %p100 = scmp.eq.s32.totalorder %s17, 1
      %p101 = por %p99, %p100
      %p102 = scmp.ne.s32.totalorder %s91, %s92
      %p103 = scmp.eq.s32.totalorder %s17, 0
      %p104 = por %p102, %p103
      %p105 = scmp.ne.s32.totalorder %s91, %s92
      %p106 = scmp.eq.s32.totalorder %s18, 1
      %p107 = por %p105, %p106
      %p109 = scmp.ne.s32.totalorder %s92, %s108
      %p110 = scmp.eq.s32.totalorder %s18, 0
      %p111 = por %p109, %p110
      %s112 = ssub.s32 %s19, %s31
      %s113 = ssub.s32 %s20, %s27
      %s114 = sor.u32 %s112, %s113
      %p115 = scmp.eq.s32.totalorder %s114, 0
      %s117 = sadd.s32 %s116, 1
      %s118 = scalar_select %p115, %s116, %s117
      %p121 = pneg %p115
      %p122 = scmp.eq.s32.totalorder %s12, 1
      %p123 = por %p121, %p122
      %p124 = scmp.ne.s32.totalorder %s116, %s119
      %p125 = scmp.eq.s32.totalorder %s12, 0
      %p126 = por %p124, %p125
      %p127 = scmp.ne.s32.totalorder %s116, %s119
      %p128 = scmp.eq.s32.totalorder %s17, 1
      %p129 = por %p127, %p128
      %p130 = scmp.ne.s32.totalorder %s119, %s120
      %p131 = scmp.eq.s32.totalorder %s17, 0
      %p132 = por %p130, %p131
      %p133 = scmp.ne.s32.totalorder %s119, %s120
      %p134 = scmp.eq.s32.totalorder %s18, 1
      %p135 = por %p133, %p134
      %p137 = scmp.ne.s32.totalorder %s120, %s136
      %p138 = scmp.eq.s32.totalorder %s18, 0
      %p139 = por %p137, %p138
      %p140 = scmp.le.s32.totalorder 1, %s12
      %p141 = scmp.lt.s32.totalorder %s12, 3
      %p142 = pnand %p140, %p141
      %p143 = pneg %p142
      // Predicated region
      $region9: #{tpu_custom_call.1} parent=5 // pred_check
        _
      $region10: #{tpu_custom_call.1} parent=5 // pred_check_branch
        %145 = sbr.rel (%p142) target = $region12
      $region11: #{tpu_custom_call.1} parent=5 // pred_region
        %s146 = ssub.s32 %s12, 1
      $region12: #{tpu_custom_call.1} parent=5 // pred_fallthru
        _
      %p147 = scmp.lt.s32.totalorder %s12, 2
      // Predicated region
      $region13: #{tpu_custom_call.1} parent=5 // pred_check
        %p148 = pneg %p147
      $region14: #{tpu_custom_call.1} parent=5 // pred_check_branch
        %150 = sbr.rel (%p148) target = $region16
      $region15: #{tpu_custom_call.1} parent=5 // pred_region
        // Predicated region
        $region17: #{tpu_custom_call.1} parent=15 // pred_check
          %p151 = pneg %p44
        $region18: #{tpu_custom_call.1} parent=15 // pred_check_branch
          %153 = sbr.rel (%p151) target = $region20
        $region19: #{tpu_custom_call.1} parent=15 // pred_region
          %p154 = scmp.lt.s32.totalorder %s19, 1
          %s155 = scalar_select %p154, %s19, 1
          %s156 = smul.addr %s155, 4
          %s157 = scalar_lea.vmem %s0, %s156
        $region20: #{tpu_custom_call.1} parent=15 // pred_fallthru
          _
        // Predicated region
        $region21: #{tpu_custom_call.1} parent=15 // pred_check
          %p158 = pneg %p70
        $region22: #{tpu_custom_call.1} parent=15 // pred_check_branch
          %160 = sbr.rel (%p158) target = $region24
        $region23: #{tpu_custom_call.1} parent=15 // pred_region
          %p161 = scmp.lt.s32.totalorder %s19, 1
          %s162 = scalar_select %p161, %s19, 1
          %s163 = smul.addr %s162, 4
          %s164 = scalar_lea.vmem %s1, %s163
        $region24: #{tpu_custom_call.1} parent=15 // pred_fallthru
          _
        // Predicated region
        $region25: #{tpu_custom_call.1} parent=15 // pred_check
          %p165 = pneg %p98
        $region26: #{tpu_custom_call.1} parent=15 // pred_check_branch
          %167 = sbr.rel (%p165) target = $region28
        $region27: #{tpu_custom_call.1} parent=15 // pred_region
          %p168 = scmp.lt.s32.totalorder %s19, 1
          %s169 = scalar_select %p168, %s19, 1
          %p170 = scmp.lt.s32.totalorder %s20, 0
          %s171 = scalar_select %p170, %s20, 0
          %s172 = sadd.s32 %s171, %s169
          %s173 = smul.addr %s172, 4
          %s174 = scalar_lea.vmem %s2, %s173
        $region28: #{tpu_custom_call.1} parent=15 // pred_fallthru
          _
      $region16: #{tpu_custom_call.1} parent=5 // pred_fallthru
        _
      %p175 = scmp.le.s32.totalorder 1, %s12
      %p176 = scmp.lt.s32.totalorder %s12, 3
      %p177 = pnand %p175, %p176
      %p178 = pneg %p177
      // Predicated region
      $region29: #{tpu_custom_call.1} parent=5 // pred_check
        _
      $region30: #{tpu_custom_call.1} parent=5 // pred_check_branch
        %180 = sbr.rel (%p177) target = $region32
      $region31: #{tpu_custom_call.1} parent=5 // pred_region
        %s181 = ssub.s32 %s12, 1
        %p182 = scmp.lt.s32.totalorder %s21, 1
        %s183 = scalar_select %p182, %s21, 1
        %s184 = smul.addr %s183, 4
        %s185 = scalar_lea.vmem %s0, %s184
        %p186 = pneg %p50
        %p187 = pneg %p47
        %p188 = scmp.lt.s32.totalorder %s21, 1
        %s189 = scalar_select %p188, %s21, 1
        %s190 = smul.addr %s189, 4
        %s191 = scalar_lea.vmem %s1, %s190
        %p192 = pneg %p76
        %p193 = pneg %p73
        %p194 = scmp.lt.s32.totalorder %s21, 1
        %s195 = scalar_select %p194, %s21, 1
        %p196 = scmp.lt.s32.totalorder %s22, 0
        %s197 = scalar_select %p196, %s22, 0
        %s198 = sadd.s32 %s197, %s195
        %s199 = smul.addr %s198, 4
        %s200 = scalar_lea.vmem %s2, %s199
        %p201 = pneg %p104
        %p202 = pneg %p101
        %p203 = pneg %p132
        %p204 = pneg %p129
        %s205 = sand.u32 %s119, 1
        %s206 = scalar_lea.sflag [#allocation3], %s205
        %s207 = sand.u32 %s119, 1
        %s208 = smul.addr %s207, 4
        %s209 = scalar_lea.vmem [#allocation2], %s208
        %p210 = scmp.lt.s32.totalorder %s21, 1
        %s211 = scalar_select %p210, %s21, 1
        %s212 = smul.addr %s211, 4
        %s213 = scalar_lea.vmem %s0, %s212
        %p214 = scmp.lt.s32.totalorder %s21, 1
        %s215 = scalar_select %p214, %s21, 1
        %s216 = smul.addr %s215, 4
        %s217 = scalar_lea.vmem %s1, %s216
        %p218 = scmp.lt.s32.totalorder %s21, 1
        %s219 = scalar_select %p218, %s21, 1
        %p220 = scmp.lt.s32.totalorder %s22, 0
        %s221 = scalar_select %p220, %s22, 0
        %s222 = sadd.s32 %s221, %s219
        %s223 = smul.addr %s222, 4
        %s224 = scalar_lea.vmem %s2, %s223
        %v225 = vld [vmem:[%s224] sm:$0xf]
        %vm226 = vcmask 125952
        %v227 = vsel %vm226, %v225, 0.0
        %228 = vadd.xlane.f32.xlu0 %v227
        %v229 = vpop.xlane.xlu0 %228
        %v230 = vmul.f32 %v225, %v225
        %v231 = vsel %vm226, %v230, 0.0
        %232 = vadd.xlane.f32.xlu0 %v231
        %v233 = vpop.xlane.xlu0 %232
        %v234 = vmul.f32 %v229, 0.0625
        %v235 = vmul.f32 %v233, 0.0625
        %v236 = vmul.f32 %v234, %v234
        %v237 = vsub.f32 %v235, %v236
        %v238 = vmax.f32 %v237, 0.0
        %v239 = vadd.f32 %v238, 1e-05
        %v240 = vrsqrt.pop %v239
        %v241 = vld [vmem:[%s213] sm:$0xf]
        %v242 = vld [vmem:[%s217] sm:$0xf]
        %v243 = vmul.f32 %v241, %v240
        %v244 = vmul.f32 %v234, %v243
        %v245 = vsub.f32 %v242, %v244
        %247 = vset.pattern.permute.xlu0 0
        %248 = vperm.xlu0 %247, %v243
        %v249 = vpop.permute.xlu0 %248
        %v251 = vmul.f32 %v225, %v249
        %253 = vset.pattern.permute.xlu0 0
        %254 = vperm.xlu0 %253, %v245
        %v255 = vpop.permute.xlu0 %254
        %v257 = vadd.f32 %v251, %v255
        %258 = vst.msk [vmem:[%s209] sm:$0xf] %vm226, %v257
        %s259 = sand.u32 %s119, 1
        %s260 = scalar_lea.sflag [#allocation3], %s259
        %s261 = sand.u32 %s119, 1
        %s262 = smul.addr %s261, 4
        %s263 = scalar_lea.vmem [#allocation2], %s262
        // Predicated region
        $region33: #{tpu_custom_call.1} parent=31 // pred_check
          %p264 = pneg %p129
        $region34: #{tpu_custom_call.1} parent=31 // pred_check_branch
          %266 = sbr.rel (%p264) target = $region36
        $region35: #{tpu_custom_call.1} parent=31 // pred_region
          %s268 = ssub.s32 64, 64
          %269 = vsyncadd %s260, %s268
          %s270 = sadd.s32 %s22, %s21
          %s271 = smul.addr %s270, 64
          %s272 = scalar_lea.hbm %s3, %s271
          %s274 = sshll.u32 %s263, 4
          %s275 = int_to_ptr.vmem [resolvable:$true] %s274
          %277 = dma.vmem_to_hbm [thread:$0]  %s275, 64, %s272, %s260
        $region36: #{tpu_custom_call.1} parent=31 // pred_fallthru
          _
      $region32: #{tpu_custom_call.1} parent=5 // pred_fallthru
        _
      %p278 = scmp.le.s32.totalorder 2, %s12
      // Predicated region
      $region37: #{tpu_custom_call.1} parent=5 // pred_check
        %p279 = pneg %p278
      $region38: #{tpu_custom_call.1} parent=5 // pred_check_branch
        %281 = sbr.rel (%p279) target = $region40
      $region39: #{tpu_custom_call.1} parent=5 // pred_region
        %s282 = ssub.s32 %s12, 2
        // Predicated region
        $region41: #{tpu_custom_call.1} parent=39 // pred_check
          %p283 = pneg %p135
        $region42: #{tpu_custom_call.1} parent=39 // pred_check_branch
          %285 = sbr.rel (%p283) target = $region44
        $region43: #{tpu_custom_call.1} parent=39 // pred_region
          %s286 = sand.u32 %s120, 1
          %s287 = scalar_lea.sflag [#allocation3], %s286
          %s288 = sand.u32 %s120, 1
          %s289 = smul.addr %s288, 4
          %s290 = scalar_lea.vmem [#allocation2], %s289
          %291 = dma.done %s287, 64
        $region44: #{tpu_custom_call.1} parent=39 // pred_fallthru
          _
      $region40: #{tpu_custom_call.1} parent=5 // pred_fallthru
        _
    $region6: #{tpu_custom_call.1} parent=1 // loop_footer
      %s16 = sadd.s32 1, %s12
    $region7: #{tpu_custom_call.1} parent=1 // loop_footer_branch
      %11 = sbr.rel target = $region3
    $region8: #{tpu_custom_call.1} parent=1 // loop_exit
      _
    %292 = vsyncpa [#allocation3], 1
    %s293 = scalar_lea.sflag [#allocation3], 1
    %294 = vsyncpa %s293, 1

</llo_original>
